<compile_context>
chip_gen: v7x
topology: tpu7x:2x2x1
jax: 0.10.0
libtpu: 0.0.40
codegen_flags: <defaults>
</compile_context>

<pallas_src>
import functools

import jax
import jax.numpy as jnp
from jax.experimental import pallas as pl
from jax.experimental.pallas import tpu as pltpu


def _dilation_sum_kernel(x_ref, m_ref, w_ref, o_ref, *, kh, kw, ph0, pw0, W):
    """x_ref: (rows, hw_pad) VMEM; m_ref: (kh*kw, hw_pad) 0/1 f32 VMEM;
    w_ref: (kh, kw) SMEM; o_ref: (rows, hw_pad) VMEM."""
    hw_pad = x_ref.shape[1]
    # TODO(synk): optional bf16 compute path for v6e/v7x (packed VPU) if the
    # caller accepts the extra rounding on the +weight.
    x = x_ref[...].astype(jnp.float32)

    acc = None
    for u in range(kh):
        du = u - ph0
        for v in range(kw):
            dv = v - pw0
            s = du * W + dv                      # flat source offset of this tap
            if s == 0:
                shifted = x
            else:
                # shifted[p] = x[(p + s) mod hw_pad]; wrap-around / cross-row
                # leakage only happens at positions the precomputed mask zeroes.
                shifted = pltpu.roll(x, shift=(-s) % hw_pad, axis=1)

            if du == 0 and dv == 0:
                # Center tap is statically always in-image: skip the mask.
                tap = shifted + w_ref[u, v]
            else:
                # Zero-padding fused as a precomputed 0/1 mask: invalid taps
                # contribute exactly 0 + weight[u, v], matching nn.Unfold.
                m = m_ref[pl.ds(u * kw + v, 1), :]          # (1, hw_pad)
                tap = shifted * m + w_ref[u, v]
            acc = tap if acc is None else jnp.maximum(acc, tap)

    o_ref[...] = acc.astype(o_ref.dtype)


def _build_tap_masks(H, W, kh, kw, ph0, pw0, hw_pad):
    """Grid-invariant (kh*kw, hw_pad) float32 0/1 validity masks, built once in
    the wrapper (keeps all iota / div / compares / ANDs out of the kernel)."""
    p = jnp.arange(H * W, dtype=jnp.int32)
    i = p // W
    j = p % W
    masks = []
    for u in range(kh):
        du = u - ph0
        for v in range(kw):
            dv = v - pw0
            si = i + du
            sj = j + dv
            masks.append((si >= 0) & (si < H) & (sj >= 0) & (sj < W))
    m = jnp.stack(masks).astype(jnp.float32)                 # (kh*kw, H*W)
    if hw_pad != H * W:
        m = jnp.pad(m, ((0, 0), (0, hw_pad - H * W)))        # tail lanes -> 0
    return m


def _pick_row_block(bc, hw_pad, itemsize, *, block_budget_bytes=2 * 1024 * 1024):
    """Rows (B*C) per grid step.

    * sublane multiple matched to the dtype (8 for f32, 16 bf16, 32 int8);
    * largest row count whose single block fits `block_budget_bytes` -- the
      real in-kernel footprint is ~8x a block (2x double-buffered input + 2x
      output + rolled-tap / masked-tap / accumulator temporaries), so 2 MiB
      blocks keep ~16 MiB live, comfortably inside v7x's 64 MiB VMEM;
    * capped at ~bc/2 when bc is large enough so the "parallel" grid axis has
      >= 2 steps and both v7x TensorCores get work;
    * the last block may be ragged (pl.cdiv grid) -- fine for this elementwise
      kernel, and much better than collapsing to tiny power-of-two blocks.
    """
    sublane = max(8, 32 // itemsize)
    if bc <= sublane:
        return bc
    rows_fit = (block_budget_bytes // (hw_pad * itemsize)) // sublane * sublane
    rows_fit = max(sublane, rows_fit)
    rb = min((bc // sublane) * sublane, rows_fit)
    if bc >= 2 * sublane:
        half = -(-((bc + 1) // 2) // sublane) * sublane      # ceil(bc/2) -> sublane
        rb = min(rb, half)
    return max(rb, sublane)


def dilation_sum_layer(x, weight, padding):
    """x: (B, C, H, W), weight: (kh, kw).

    padding: (ph_before, ph_after, pw_before, pw_after) -- same convention as
    the PyTorch module (dim-0 = H first, then dim-1 = W).
    """
    kh, kw = weight.shape
    ph0, ph1, pw0, pw1 = padding
    B, C, H, W = x.shape
    Ho = H + ph0 + ph1 - kh + 1
    Wo = W + pw0 + pw1 - kw + 1
    if (Ho, Wo) != (H, W):
        # TODO(synk): general (non-'same') padding needs a different output
        # layout; only the module's default 'same' configuration is supported.
        raise NotImplementedError(
            "only 'same'-style padding (output size == input size) is supported")

    bc = B * C
    hw = H * W
    hw_pad = -(-hw // 128) * 128            # lane-dense width -> unmasked vst

    x2 = x.reshape(bc, hw)                  # free row-major reshape; no jnp.pad of the image
    if hw_pad != hw:
        x2 = jnp.pad(x2, ((0, 0), (0, hw_pad - hw)))

    masks = _build_tap_masks(H, W, kh, kw, ph0, pw0, hw_pad)
    weight = weight.astype(jnp.float32)

    row_block = _pick_row_block(bc, hw_pad, x2.dtype.itemsize)
    grid = (pl.cdiv(bc, row_block),)

    # Explicit scoped-VMEM limit: >= 2x the ~8x-block in-kernel footprint,
    # never above v7x's 64 MiB physical per-TC VMEM.
    block_bytes = row_block * hw_pad * x2.dtype.itemsize
    mask_bytes = masks.size * 4
    vmem_limit = int(min(max(32 << 20, 8 * block_bytes + 2 * mask_bytes), 64 << 20))

    kernel = functools.partial(_dilation_sum_kernel, kh=kh, kw=kw,
                               ph0=ph0, pw0=pw0, W=W)

    out2 = pl.pallas_call(
        kernel,
        out_shape=jax.ShapeDtypeStruct((bc, hw_pad), x.dtype),
        grid=grid,
        in_specs=[
            # lane-dense (rows, hw_pad) tile of the flattened image rows.
            pl.BlockSpec((row_block, hw_pad), lambda r: (r, 0)),
            # grid-invariant per-tap edge masks (tiny, constant block).
            pl.BlockSpec((kh * kw, hw_pad), lambda r: (0, 0)),
            # small structuring element: whole array, scalar memory.
            pl.BlockSpec(memory_space=pltpu.MemorySpace.SMEM),
        ],
        out_specs=pl.BlockSpec((row_block, hw_pad), lambda r: (r, 0)),
        compiler_params=pltpu.CompilerParams(
            dimension_semantics=("parallel",),
            vmem_limit_bytes=vmem_limit),
    )(x2, masks, weight)

    if hw_pad != hw:
        out2 = out2[:, :hw]
    return out2.reshape(B, C, H, W)


def _reference(x, weight, padding):
    """Pure-JAX reference of the same forward pass (for correctness check)."""
    kh, kw = weight.shape
    ph0, ph1, pw0, pw1 = padding
    xp = jnp.pad(x, ((0, 0), (0, 0), (ph0, ph1), (pw0, pw1)),
                 constant_values=0.0)
    Hp, Wp = xp.shape[-2:]
    Ho, Wo = Hp - kh + 1, Wp - kw + 1
    acc = jnp.full(x.shape[:2] + (Ho, Wo), -jnp.inf, dtype=jnp.float32)
    for u in range(kh):
        for v in range(kw):
            acc = jnp.maximum(acc, xp[:, :, u:u + Ho, v:v + Wo] + weight[u, v])
    return acc


if __name__ == "__main__":
    key = jax.random.PRNGKey(0)
    kx, kw_, kx2, kw2 = jax.random.split(key, 4)

    # Module config: kernel_size=(3, 3), padding='same'
    kernel_size = (3, 3)
    padding = (kernel_size[0] // 2, kernel_size[0] // 2,
               kernel_size[1] // 2, kernel_size[1] // 2)

    B, C, H, W = 2, 4, 16, 16
    x = jax.random.normal(kx, (B, C, H, W), dtype=jnp.float32)
    # init_weights: torch.randn(kernel_size) (init_value is unused in the
    # original code) -> deterministic normal init here.
    weight = jax.random.normal(kw_, kernel_size, dtype=jnp.float32)

    out = jax.block_until_ready(dilation_sum_layer(x, weight, padding))
    ref = _reference(x, weight, padding)
    assert out.shape == (B, C, H, W), out.shape
    assert jnp.allclose(out, ref, atol=1e-5, rtol=1e-5), "mismatch vs reference"

    # Extra correctness check: non-multiple-of-128 spatial size + ragged last
    # row block (exercises the lane-padding and pl.cdiv tail code paths).
    B2, C2, H2, W2 = 3, 5, 10, 10
    x_b = jax.random.normal(kx2, (B2, C2, H2, W2), dtype=jnp.float32)
    w_b = jax.random.normal(kw2, kernel_size, dtype=jnp.float32)
    out_b = jax.block_until_ready(dilation_sum_layer(x_b, w_b, padding))
    ref_b = _reference(x_b, w_b, padding)
    assert jnp.allclose(out_b, ref_b, atol=1e-5, rtol=1e-5), "mismatch (ragged case)"

    print("KERNEL_OK")
</pallas_src>

<mosaic_0001>
module attributes {stable_mosaic.version = 11 : i64} {
  func.func @_dilation_sum_kernel(%arg0: i32, %arg1: memref<8x256xf32, #tpu.memory_space<vmem>>, %arg2: memref<9x256xf32, #tpu.memory_space<vmem>>, %arg3: memref<3x3xf32, #tpu.memory_space<smem>>, %arg4: memref<8x256xf32, #tpu.memory_space<vmem>>) attributes {dimension_semantics = [#tpu.dimension_semantics<parallel>], iteration_bounds = array<i64: 1>, scalar_prefetch = 0 : i64, scratch_operands = 0 : i64, tpu.core_type = #tpu.core_type<tc>, window_params = [{transform_indices = @transform_0, window_bounds = array<i64: 8, 256>}, {pipeline_mode = #tpu.pipeline_mode<synchronous>, transform_indices = @transform_1, window_bounds = array<i64: 9, 256>}, {transform_indices = @transform_2, window_bounds = array<i64: 3, 3>}, {transform_indices = @transform_3, window_bounds = array<i64: 8, 256>}]} {
    %c0 = arith.constant 0 : index
    %c0_0 = arith.constant 0 : index
    %0 = vector.load %arg1[%c0, %c0_0] : memref<8x256xf32, #tpu.memory_space<vmem>>, vector<8x256xf32>
    %c17_i32 = arith.constant 17 : i32
    %1 = tpu.dynamic_rotate %0 by %c17_i32 dim 1 : vector<8x256xf32>, i32 -> vector<8x256xf32>
    %c0_1 = arith.constant 0 : index
    %c0_2 = arith.constant 0 : index
    %2 = vector.load %arg2[%c0_1, %c0_2] : memref<9x256xf32, #tpu.memory_space<vmem>>, vector<1x256xf32>
    %3 = vector.broadcast %2 : vector<1x256xf32> to vector<8x256xf32>
    %4 = arith.mulf %1, %3 : vector<8x256xf32>
    %c0_3 = arith.constant 0 : index
    %c0_4 = arith.constant 0 : index
    %5 = memref.load %arg3[%c0_3, %c0_4] : memref<3x3xf32, #tpu.memory_space<smem>>
    %6 = vector.broadcast %5 : f32 to vector<8x256xf32>
    %7 = arith.addf %4, %6 : vector<8x256xf32>
    %c16_i32 = arith.constant 16 : i32
    %8 = tpu.dynamic_rotate %0 by %c16_i32 dim 1 : vector<8x256xf32>, i32 -> vector<8x256xf32>
    %c1 = arith.constant 1 : index
    %c0_5 = arith.constant 0 : index
    %9 = vector.load %arg2[%c1, %c0_5] : memref<9x256xf32, #tpu.memory_space<vmem>>, vector<1x256xf32>
    %10 = vector.broadcast %9 : vector<1x256xf32> to vector<8x256xf32>
    %11 = arith.mulf %8, %10 : vector<8x256xf32>
    %c0_6 = arith.constant 0 : index
    %c1_7 = arith.constant 1 : index
    %12 = memref.load %arg3[%c0_6, %c1_7] : memref<3x3xf32, #tpu.memory_space<smem>>
    %13 = vector.broadcast %12 : f32 to vector<8x256xf32>
    %14 = arith.addf %11, %13 : vector<8x256xf32>
    %15 = arith.maximumf %7, %14 : vector<8x256xf32>
    %c15_i32 = arith.constant 15 : i32
    %16 = tpu.dynamic_rotate %0 by %c15_i32 dim 1 : vector<8x256xf32>, i32 -> vector<8x256xf32>
    %c2 = arith.constant 2 : index
    %c0_8 = arith.constant 0 : index
    %17 = vector.load %arg2[%c2, %c0_8] : memref<9x256xf32, #tpu.memory_space<vmem>>, vector<1x256xf32>
    %18 = vector.broadcast %17 : vector<1x256xf32> to vector<8x256xf32>
    %19 = arith.mulf %16, %18 : vector<8x256xf32>
    %c0_9 = arith.constant 0 : index
    %c2_10 = arith.constant 2 : index
    %20 = memref.load %arg3[%c0_9, %c2_10] : memref<3x3xf32, #tpu.memory_space<smem>>
    %21 = vector.broadcast %20 : f32 to vector<8x256xf32>
    %22 = arith.addf %19, %21 : vector<8x256xf32>
    %23 = arith.maximumf %15, %22 : vector<8x256xf32>
    %c1_i32 = arith.constant 1 : i32
    %24 = tpu.dynamic_rotate %0 by %c1_i32 dim 1 : vector<8x256xf32>, i32 -> vector<8x256xf32>
    %c3 = arith.constant 3 : index
    %c0_11 = arith.constant 0 : index
    %25 = vector.load %arg2[%c3, %c0_11] : memref<9x256xf32, #tpu.memory_space<vmem>>, vector<1x256xf32>
    %26 = vector.broadcast %25 : vector<1x256xf32> to vector<8x256xf32>
    %27 = arith.mulf %24, %26 : vector<8x256xf32>
    %c1_12 = arith.constant 1 : index
    %c0_13 = arith.constant 0 : index
    %28 = memref.load %arg3[%c1_12, %c0_13] : memref<3x3xf32, #tpu.memory_space<smem>>
    %29 = vector.broadcast %28 : f32 to vector<8x256xf32>
    %30 = arith.addf %27, %29 : vector<8x256xf32>
    %31 = arith.maximumf %23, %30 : vector<8x256xf32>
    %c1_14 = arith.constant 1 : index
    %c1_15 = arith.constant 1 : index
    %32 = memref.load %arg3[%c1_14, %c1_15] : memref<3x3xf32, #tpu.memory_space<smem>>
    %33 = vector.broadcast %32 : f32 to vector<8x256xf32>
    %34 = arith.addf %0, %33 : vector<8x256xf32>
    %35 = arith.maximumf %31, %34 : vector<8x256xf32>
    %c255_i32 = arith.constant 255 : i32
    %36 = tpu.dynamic_rotate %0 by %c255_i32 dim 1 : vector<8x256xf32>, i32 -> vector<8x256xf32>
    %c5 = arith.constant 5 : index
    %c0_16 = arith.constant 0 : index
    %37 = vector.load %arg2[%c5, %c0_16] : memref<9x256xf32, #tpu.memory_space<vmem>>, vector<1x256xf32>
    %38 = vector.broadcast %37 : vector<1x256xf32> to vector<8x256xf32>
    %39 = arith.mulf %36, %38 : vector<8x256xf32>
    %c1_17 = arith.constant 1 : index
    %c2_18 = arith.constant 2 : index
    %40 = memref.load %arg3[%c1_17, %c2_18] : memref<3x3xf32, #tpu.memory_space<smem>>
    %41 = vector.broadcast %40 : f32 to vector<8x256xf32>
    %42 = arith.addf %39, %41 : vector<8x256xf32>
    %43 = arith.maximumf %35, %42 : vector<8x256xf32>
    %c241_i32 = arith.constant 241 : i32
    %44 = tpu.dynamic_rotate %0 by %c241_i32 dim 1 : vector<8x256xf32>, i32 -> vector<8x256xf32>
    %c6 = arith.constant 6 : index
    %c0_19 = arith.constant 0 : index
    %45 = vector.load %arg2[%c6, %c0_19] : memref<9x256xf32, #tpu.memory_space<vmem>>, vector<1x256xf32>
    %46 = vector.broadcast %45 : vector<1x256xf32> to vector<8x256xf32>
    %47 = arith.mulf %44, %46 : vector<8x256xf32>
    %c2_20 = arith.constant 2 : index
    %c0_21 = arith.constant 0 : index
    %48 = memref.load %arg3[%c2_20, %c0_21] : memref<3x3xf32, #tpu.memory_space<smem>>
    %49 = vector.broadcast %48 : f32 to vector<8x256xf32>
    %50 = arith.addf %47, %49 : vector<8x256xf32>
    %51 = arith.maximumf %43, %50 : vector<8x256xf32>
    %c240_i32 = arith.constant 240 : i32
    %52 = tpu.dynamic_rotate %0 by %c240_i32 dim 1 : vector<8x256xf32>, i32 -> vector<8x256xf32>
    %c7 = arith.constant 7 : index
    %c0_22 = arith.constant 0 : index
    %53 = vector.load %arg2[%c7, %c0_22] : memref<9x256xf32, #tpu.memory_space<vmem>>, vector<1x256xf32>
    %54 = vector.broadcast %53 : vector<1x256xf32> to vector<8x256xf32>
    %55 = arith.mulf %52, %54 : vector<8x256xf32>
    %c2_23 = arith.constant 2 : index
    %c1_24 = arith.constant 1 : index
    %56 = memref.load %arg3[%c2_23, %c1_24] : memref<3x3xf32, #tpu.memory_space<smem>>
    %57 = vector.broadcast %56 : f32 to vector<8x256xf32>
    %58 = arith.addf %55, %57 : vector<8x256xf32>
    %59 = arith.maximumf %51, %58 : vector<8x256xf32>
    %c239_i32 = arith.constant 239 : i32
    %60 = tpu.dynamic_rotate %0 by %c239_i32 dim 1 : vector<8x256xf32>, i32 -> vector<8x256xf32>
    %c8 = arith.constant 8 : index
    %c0_25 = arith.constant 0 : index
    %61 = vector.load %arg2[%c8, %c0_25] : memref<9x256xf32, #tpu.memory_space<vmem>>, vector<1x256xf32>
    %62 = vector.broadcast %61 : vector<1x256xf32> to vector<8x256xf32>
    %63 = arith.mulf %60, %62 : vector<8x256xf32>
    %c2_26 = arith.constant 2 : index
    %c2_27 = arith.constant 2 : index
    %64 = memref.load %arg3[%c2_26, %c2_27] : memref<3x3xf32, #tpu.memory_space<smem>>
    %65 = vector.broadcast %64 : f32 to vector<8x256xf32>
    %66 = arith.addf %63, %65 : vector<8x256xf32>
    %67 = arith.maximumf %59, %66 : vector<8x256xf32>
    %c0_28 = arith.constant 0 : index
    %c0_29 = arith.constant 0 : index
    %68 = vector.load %arg4[%c0_28, %c0_29] : memref<8x256xf32, #tpu.memory_space<vmem>>, vector<8x256xf32>
    tpu.vector_store %arg4[%c0_28, %c0_29], %67 {strides = array<i32>} : memref<8x256xf32, #tpu.memory_space<vmem>>, vector<8x256xf32>,
    return
  }
  func.func @transform_0(%arg0: i32) -> (i32, i32) {
    %c0_i32 = arith.constant 0 : i32
    %c0_i32_0 = arith.constant 0 : i32
    return %arg0, %c0_i32 : i32, i32
  }
  func.func @transform_1(%arg0: i32) -> (i32, i32) {
    %c0_i32 = arith.constant 0 : i32
    %c0_i32_0 = arith.constant 0 : i32
    %c0_i32_1 = arith.constant 0 : i32
    return %c0_i32, %c0_i32_0 : i32, i32
  }
  func.func @transform_2(%arg0: i32) -> (i32, i32) {
    %c0_i32 = arith.constant 0 : i32
    %c0_i32_0 = arith.constant 0 : i32
    %c0_i32_1 = arith.constant 0 : i32
    return %c0_i32, %c0_i32_0 : i32, i32
  }
  func.func @transform_3(%arg0: i32) -> (i32, i32) {
    %c0_i32 = arith.constant 0 : i32
    %c0_i32_0 = arith.constant 0 : i32
    return %arg0, %c0_i32 : i32, i32
  }
}

</mosaic_0001>

<llo_original>
// kernel: tpu_custom_call.1
$region0: #{tpu_custom_call.1}
  #allocation0 [shape = 'u32[]', space=smem, size = 0x4, offset = 0x4, fixed_abs, tag = 'smem constant byte address 0x4 - core index']
  #allocation1 [shape = 'u32[144,128]{1,0:T(1,128)}', space=vmem, size = 0x12000, scoped, tag = 'internal scratch']
  %s0 = inlined_call_operand.hbm [shape: f32[8,256], index: 0, kind: input, shape index: {}]
  %s1 = inlined_call_operand.hbm [shape: f32[9,256], index: 1, kind: input, shape index: {}]
  %s2 = inlined_call_operand.vmem [shape: f32[3,3], index: 2, kind: input, shape index: {}]
  %s3 = inlined_call_operand.hbm [shape: f32[8,256], index: 3, kind: output, shape index: {}]
  %s4 = sld [smem:[#allocation0]]
  $region34: #{tpu_custom_call.1} parent=0
    _
  %s6 = ssub.s32 1, %s4
  %s7 = scalar_select 0, %s6, %s4
  $region1: #{tpu_custom_call.1} parent=0
    #allocation2 [shape = 'u8[8192]{0}', space=vmem, size = 0x2000, scoped, tag = 'input window, operand 0, single buffered']
    #allocation3 [shape = 's32[1]{0}', space=sflag, size = 0x4, scoped, tag = 'scoped memory for tpu_custom_call.1']
    #allocation4 [shape = 's32[1]{0}', space=sflag, size = 0x4, scoped, tag = 'scoped memory for tpu_custom_call.1']
    #allocation5 [shape = 's32[1]{0}', space=sflag, size = 0x4, scoped, tag = 'scoped memory for tpu_custom_call.1']
    #allocation6 [shape = 'u8[16384]{0}', space=vmem, size = 0x4000, scoped, tag = 'input window, operand 1, single buffered']
    #allocation7 [shape = 's32[1]{0}', space=sflag, size = 0x4, scoped, tag = 'scoped memory for tpu_custom_call.1']
    #allocation8 [shape = 'u8[2048]{0}', space=smem, size = 0x800, scoped, tag = 'input window, operand 2, single buffered']
    #allocation9 [shape = 'u8[8192]{0}', space=vmem, size = 0x2000, scoped, tag = 'output window, operand 0, single buffered']
    %8 = vsyncpa [#allocation3], 0
    %9 = vsyncpa [#allocation7], 0
    %10 = vsyncpa [#allocation5], 0
    %11 = vsyncpa [#allocation4], 0
    // Predicated region
    $region2: #{tpu_custom_call.1} parent=1 // pred_check
      _
    $region3: #{tpu_custom_call.1} parent=1 // pred_check_branch
      %13 = sbr.rel (0) target = $region5
    $region4: #{tpu_custom_call.1} parent=1 // pred_region
      %s15 = ssub.s32 256, 256
      %16 = vsyncadd [#allocation3], %s15
      %s18 = sshll.u32 [#allocation2], 4
      %s19 = int_to_ptr.vmem [resolvable:$true] %s18
      %21 = dma.hbm_to_vmem [thread:$0]  %s0, 256, %s19, [#allocation3]
    $region5: #{tpu_custom_call.1} parent=1 // pred_fallthru
      _
    // Predicated region
    $region6: #{tpu_custom_call.1} parent=1 // pred_check
      _
    $region7: #{tpu_custom_call.1} parent=1 // pred_check_branch
      %23 = sbr.rel (0) target = $region9
    $region8: #{tpu_custom_call.1} parent=1 // pred_region
      %s25 = ssub.s32 512, 512
      %26 = vsyncadd [#allocation7], %s25
      %s27 = sshll.u32 [#allocation6], 4
      %s28 = int_to_ptr.vmem [resolvable:$true] %s27
      %33 = dma.hbm_to_vmem [thread:$0]  %s1, 512, %s28, [#allocation7], 256, 256, 16
    $region9: #{tpu_custom_call.1} parent=1 // pred_fallthru
      _
    // Predicated region
    $region10: #{tpu_custom_call.1} parent=1 // pred_check
      _
    $region11: #{tpu_custom_call.1} parent=1 // pred_check_branch
      %35 = sbr.rel (0) target = $region13
    $region12: #{tpu_custom_call.1} parent=1 // pred_region
      %s37 = ssub.s32 64, 64
      %38 = vsyncadd [#allocation5], %s37
      %s40 = sshll.u32 %s2, 4
      %s41 = int_to_ptr.vmem [resolvable:$true] %s40
      %43 = dma.vmem_to_smem %s41, 64, [#allocation8], [#allocation5]
    $region13: #{tpu_custom_call.1} parent=1 // pred_fallthru
      _
    // Predicated region
    $region14: #{tpu_custom_call.1} parent=1 // pred_check
      _
    $region15: #{tpu_custom_call.1} parent=1 // pred_check_branch
      %45 = sbr.rel (0) target = $region17
    $region16: #{tpu_custom_call.1} parent=1 // pred_region
      %46 = dma.done [#allocation3], 256
    $region17: #{tpu_custom_call.1} parent=1 // pred_fallthru
      _
    // Predicated region
    $region18: #{tpu_custom_call.1} parent=1 // pred_check
      _
    $region19: #{tpu_custom_call.1} parent=1 // pred_check_branch
      %48 = sbr.rel (0) target = $region21
    $region20: #{tpu_custom_call.1} parent=1 // pred_region
      %49 = dma.done [#allocation7], 512
    $region21: #{tpu_custom_call.1} parent=1 // pred_fallthru
      _
    // Predicated region
    $region22: #{tpu_custom_call.1} parent=1 // pred_check
      _
    $region23: #{tpu_custom_call.1} parent=1 // pred_check_branch
      %51 = sbr.rel (0) target = $region25
    $region24: #{tpu_custom_call.1} parent=1 // pred_region
      %52 = dma.done [#allocation5], 64
    $region25: #{tpu_custom_call.1} parent=1 // pred_fallthru
      _
    %53 = sfence
    %v54 = vld [vmem:[#allocation2] sm:$0xff]
    %v55 = vld [vmem:[#allocation2 + $0x8] sm:$0xff]
    %56 = vrot.lane.b32.xlu0 %v54, 17
    %v57 = vpop.permute.xlu0 %56
    %58 = vrot.lane.b32.xlu0 %v55, 17
    %v59 = vpop.permute.xlu0 %58
    %v60 = vlaneseq
    %v61 = vand.u32 %v60, 127
    %vm62 = vcmp.lt.s32.totalorder %v61, 17
    %v63 = vsel %vm62, %v57, %v59
    %v64 = vsel %vm62, %v59, %v57
    %v65 = vld [vmem:[#allocation6] ss:$8 sm:$0x3]
    %v67 = vlaneseq
    %v68 = vshrl.u32 %v67, 7
    %v69 = vsub.s32 0, %v68
    %v70 = vrot.slane %v65, %v69
    %v71 = vlaneseq
    %v72 = vshrl.u32 %v71, 7
    %v73 = vsub.s32 1, %v72
    %v74 = vrot.slane %v65, %v73
    %v77 = vmul.f32 %v64, %v70
    %v78 = vmul.f32 %v63, %v74
    %s79 = sld [smem:[#allocation8]]
    %v80 = vstv %s79
    %v81 = vadd.f32 %v77, %v80
    %v82 = vadd.f32 %v78, %v80
    %83 = vrot.lane.b32.xlu0 %v54, 16
    %v84 = vpop.permute.xlu0 %83
    %85 = vrot.lane.b32.xlu0 %v55, 16
    %v86 = vpop.permute.xlu0 %85
    %vm87 = vcmp.lt.s32.totalorder %v61, 16
    %v88 = vsel %vm87, %v84, %v86
    %v89 = vsel %vm87, %v86, %v84
    %s90 = scalar_lea.vmem [#allocation6], 1
    %v91 = vld [vmem:[%s90] ss:$8 sm:$0x3]
    %v93 = vlaneseq
    %v94 = vshrl.u32 %v93, 7
    %v95 = vsub.s32 0, %v94
    %v96 = vrot.slane %v91, %v95
    %v97 = vlaneseq
    %v98 = vshrl.u32 %v97, 7
    %v99 = vsub.s32 1, %v98
    %v100 = vrot.slane %v91, %v99
    %v103 = vmul.f32 %v89, %v96
    %v104 = vmul.f32 %v88, %v100
    %s105 = sld [smem:[#allocation8 + $0x1]]
    %v106 = vstv %s105
    %v107 = vadd.f32 %v103, %v106
    %v108 = vadd.f32 %v104, %v106
    %v109 = vmax.f32 %v81, %v107
    %v110 = vmax.f32 %v82, %v108
    %111 = vrot.lane.b32.xlu0 %v54, 15
    %v112 = vpop.permute.xlu0 %111
    %113 = vrot.lane.b32.xlu0 %v55, 15
    %v114 = vpop.permute.xlu0 %113
    %vm115 = vcmp.lt.s32.totalorder %v61, 15
    %v116 = vsel %vm115, %v112, %v114
    %v117 = vsel %vm115, %v114, %v112
    %s118 = scalar_lea.vmem [#allocation6], 2
    %v119 = vld [vmem:[%s118] ss:$8 sm:$0x3]
    %v121 = vlaneseq
    %v122 = vshrl.u32 %v121, 7
    %v123 = vsub.s32 0, %v122
    %v124 = vrot.slane %v119, %v123
    %v125 = vlaneseq
    %v126 = vshrl.u32 %v125, 7
    %v127 = vsub.s32 1, %v126
    %v128 = vrot.slane %v119, %v127
    %v131 = vmul.f32 %v117, %v124
    %v132 = vmul.f32 %v116, %v128
    %s133 = sld [smem:[#allocation8 + $0x2]]
    %v134 = vstv %s133
    %v135 = vadd.f32 %v131, %v134
    %v136 = vadd.f32 %v132, %v134
    %v137 = vmax.f32 %v109, %v135
    %v138 = vmax.f32 %v110, %v136
    %139 = vrot.lane.b32.xlu0 %v54, 1
    %v140 = vpop.permute.xlu0 %139
    %141 = vrot.lane.b32.xlu0 %v55, 1
    %v142 = vpop.permute.xlu0 %141
    %vm143 = vcmp.lt.s32.totalorder %v61, 1
    %v144 = vsel %vm143, %v140, %v142
    %v145 = vsel %vm143, %v142, %v140
    %s146 = scalar_lea.vmem [#allocation6], 3
    %v147 = vld [vmem:[%s146] ss:$8 sm:$0x3]
    %v149 = vlaneseq
    %v150 = vshrl.u32 %v149, 7
    %v151 = vsub.s32 0, %v150
    %v152 = vrot.slane %v147, %v151
    %v153 = vlaneseq
    %v154 = vshrl.u32 %v153, 7
    %v155 = vsub.s32 1, %v154
    %v156 = vrot.slane %v147, %v155
    %v159 = vmul.f32 %v145, %v152
    %v160 = vmul.f32 %v144, %v156
    %s161 = sld [smem:[#allocation8 + $0x80]]
    %v162 = vstv %s161
    %v163 = vadd.f32 %v159, %v162
    %v164 = vadd.f32 %v160, %v162
    %v165 = vmax.f32 %v137, %v163
    %v166 = vmax.f32 %v138, %v164
    %s167 = sld [smem:[#allocation8 + $0x81]]
    %v168 = vstv %s167
    %v169 = vadd.f32 %v54, %v168
    %v170 = vadd.f32 %v55, %v168
    %v171 = vmax.f32 %v165, %v169
    %v172 = vmax.f32 %v166, %v170
    %173 = vrot.lane.b32.xlu0 %v54, 127
    %v174 = vpop.permute.xlu0 %173
    %175 = vrot.lane.b32.xlu0 %v55, 127
    %v176 = vpop.permute.xlu0 %175
    %vm177 = vcmp.lt.s32.totalorder %v61, 127
    %v178 = vsel %vm177, %v174, %v176
    %v179 = vsel %vm177, %v176, %v174
    %s180 = scalar_lea.vmem [#allocation6], 5
    %v181 = vld [vmem:[%s180] ss:$8 sm:$0x3]
    %v183 = vlaneseq
    %v184 = vshrl.u32 %v183, 7
    %v185 = vsub.s32 0, %v184
    %v186 = vrot.slane %v181, %v185
    %v187 = vlaneseq
    %v188 = vshrl.u32 %v187, 7
    %v189 = vsub.s32 1, %v188
    %v190 = vrot.slane %v181, %v189
    %v193 = vmul.f32 %v178, %v186
    %v194 = vmul.f32 %v179, %v190
    %s195 = sld [smem:[#allocation8 + $0x82]]
    %v196 = vstv %s195
    %v197 = vadd.f32 %v193, %v196
    %v198 = vadd.f32 %v194, %v196
    %v199 = vmax.f32 %v171, %v197
    %v200 = vmax.f32 %v172, %v198
    %201 = vrot.lane.b32.xlu0 %v54, 113
    %v202 = vpop.permute.xlu0 %201
    %203 = vrot.lane.b32.xlu0 %v55, 113
    %v204 = vpop.permute.xlu0 %203
    %vm205 = vcmp.lt.s32.totalorder %v61, 113
    %v206 = vsel %vm205, %v202, %v204
    %v207 = vsel %vm205, %v204, %v202
    %s208 = scalar_lea.vmem [#allocation6], 6
    %v209 = vld [vmem:[%s208] ss:$8 sm:$0x3]
    %v211 = vlaneseq
    %v212 = vshrl.u32 %v211, 7
    %v213 = vsub.s32 0, %v212
    %v214 = vrot.slane %v209, %v213
    %v215 = vlaneseq
    %v216 = vshrl.u32 %v215, 7
    %v217 = vsub.s32 1, %v216
    %v218 = vrot.slane %v209, %v217
    %v221 = vmul.f32 %v206, %v214
    %v222 = vmul.f32 %v207, %v218
    %s223 = sld [smem:[#allocation8 + $0x100]]
    %v224 = vstv %s223
    %v225 = vadd.f32 %v221, %v224
    %v226 = vadd.f32 %v222, %v224
    %v227 = vmax.f32 %v199, %v225
    %v228 = vmax.f32 %v200, %v226
    %229 = vrot.lane.b32.xlu0 %v54, 112
    %v230 = vpop.permute.xlu0 %229
    %231 = vrot.lane.b32.xlu0 %v55, 112
    %v232 = vpop.permute.xlu0 %231
    %vm233 = vcmp.lt.s32.totalorder %v61, 112
    %v234 = vsel %vm233, %v230, %v232
    %v235 = vsel %vm233, %v232, %v230
    %s236 = scalar_lea.vmem [#allocation6], 7
    %v237 = vld [vmem:[%s236] ss:$8 sm:$0x3]
    %v239 = vlaneseq
    %v240 = vshrl.u32 %v239, 7
    %v241 = vsub.s32 0, %v240
    %v242 = vrot.slane %v237, %v241
    %v243 = vlaneseq
    %v244 = vshrl.u32 %v243, 7
    %v245 = vsub.s32 1, %v244
    %v246 = vrot.slane %v237, %v245
    %v249 = vmul.f32 %v234, %v242
    %v250 = vmul.f32 %v235, %v246
    %s251 = sld [smem:[#allocation8 + $0x101]]
    %v252 = vstv %s251
    %v253 = vadd.f32 %v249, %v252
    %v254 = vadd.f32 %v250, %v252
    %v255 = vmax.f32 %v227, %v253
    %v256 = vmax.f32 %v228, %v254
    %257 = vrot.lane.b32.xlu0 %v54, 111
    %v258 = vpop.permute.xlu0 %257
    %259 = vrot.lane.b32.xlu0 %v55, 111
    %v260 = vpop.permute.xlu0 %259
    %vm261 = vcmp.lt.s32.totalorder %v61, 111
    %v262 = vsel %vm261, %v258, %v260
    %v263 = vsel %vm261, %v260, %v258
    %s264 = scalar_lea.vmem [#allocation6], 16
    %v265 = vld [vmem:[%s264] ss:$8 sm:$0x3]
    %v267 = vlaneseq
    %v268 = vshrl.u32 %v267, 7
    %v269 = vsub.s32 0, %v268
    %v270 = vrot.slane %v265, %v269
    %v271 = vlaneseq
    %v272 = vshrl.u32 %v271, 7
    %v273 = vsub.s32 1, %v272
    %v274 = vrot.slane %v265, %v273
    %v277 = vmul.f32 %v262, %v270
    %v278 = vmul.f32 %v263, %v274
    %s279 = sld [smem:[#allocation8 + $0x102]]
    %v280 = vstv %s279
    %v281 = vadd.f32 %v277, %v280
    %v282 = vadd.f32 %v278, %v280
    %v283 = vmax.f32 %v255, %v281
    %v284 = vmax.f32 %v256, %v282
    %285 = vst [vmem:[#allocation9] sm:$0xff] %v283
    %286 = vst [vmem:[#allocation9 + $0x8] sm:$0xff] %v284
    // Predicated region
    $region26: #{tpu_custom_call.1} parent=1 // pred_check
      _
    $region27: #{tpu_custom_call.1} parent=1 // pred_check_branch
      %288 = sbr.rel (0) target = $region29
    $region28: #{tpu_custom_call.1} parent=1 // pred_region
      %s290 = ssub.s32 256, 256
      %291 = vsyncadd [#allocation4], %s290
      %s293 = sshll.u32 [#allocation9], 4
      %s294 = int_to_ptr.vmem [resolvable:$true] %s293
      %296 = dma.vmem_to_hbm [thread:$0]  %s294, 256, %s3, [#allocation4]
    $region29: #{tpu_custom_call.1} parent=1 // pred_fallthru
      _
    // Predicated region
    $region30: #{tpu_custom_call.1} parent=1 // pred_check
      _
    $region31: #{tpu_custom_call.1} parent=1 // pred_check_branch
      %298 = sbr.rel (0) target = $region33
    $region32: #{tpu_custom_call.1} parent=1 // pred_region
      %299 = dma.done [#allocation4], 256
    $region33: #{tpu_custom_call.1} parent=1 // pred_fallthru
      _
    %300 = vsyncpa [#allocation3], 1
    %301 = vsyncpa [#allocation7], 1
    %302 = vsyncpa [#allocation4], 1
    %303 = vsyncpa [#allocation5], 1

</llo_original>
